<compile_context>
chip_gen: v7x
topology: tpu7x:2x2x1
jax: 0.10.0
libtpu: 0.0.40
codegen_flags: <defaults>
</compile_context>

<pallas_src>
import jax
import jax.numpy as jnp
from jax.experimental import pallas as pl
from jax.experimental.pallas import tpu as pltpu


def _sigmoid_kernel(x_ref, o_ref):
    # Elementwise sigmoid on the current VMEM tile. Single EUP push per
    # element; for a memory-bound op this is fully hidden under DMA.
    x = x_ref[...]
    if x.dtype != jnp.float32:
        x = x.astype(jnp.float32)
    y = 0.5 * jnp.tanh(0.5 * x) + 0.5
    o_ref[...] = y.astype(o_ref.dtype)


def _tpu_block_config():
    """Return (block_bytes_target, vmem_limit_bytes) per TPU generation."""
    try:
        kind = jax.devices()[0].device_kind.lower()
    except Exception:
        kind = ""
    if "v7" in kind:
        # ~3.2 TB/s HBM: 8 MiB blocks cut the ~0.35 us/step tax to ~5-7%.
        # 4 x 8 MiB buffers = 32 MiB exceeds the 32 MiB default scoped limit,
        # so raise it explicitly (64 MiB physical per TensorCore).
        return 8 << 20, 48 << 20
    if "v5e" in kind or "v5 lite" in kind or "v5lite" in kind:
        # Slowest HBM already amortizes step overhead at 2 MiB; 4 x 2 MiB = 8
        # MiB stays comfortably under the limit (128 MiB physical VMEM).
        return 2 << 20, 24 << 20
    # v6e / default: 4 MiB blocks, 16 MiB of buffers, 128 MiB physical VMEM.
    return 4 << 20, 32 << 20


def none_scaled_sigmoid(x: jax.Array) -> jax.Array:
    """Elementwise sigmoid matching torch.sigmoid (shape/dtype preserved)."""
    orig_shape = x.shape
    dtype = x.dtype
    n = x.size
    if n == 0:
        return x

    itemsize = jnp.dtype(dtype).itemsize
    packing = max(1, 4 // itemsize)          # elems per 32-bit sublane word
    sub_mult = 8 * packing                   # 8 f32 / 16 bf16 / 32 int8

    block_bytes, vmem_limit = _tpu_block_config()
    total_bytes = n * itemsize
    # Keep >= 4 grid steps for big arrays (v7x dual-TC + DMA/compute overlap),
    # but never shrink below one minimal (sub_mult x 128) tile.
    tile_bytes = min(block_bytes, max(sub_mult * 128 * itemsize, total_bytes // 4))

    compiler_params = pltpu.CompilerParams(
        dimension_semantics=("parallel",),
        vmem_limit_bytes=vmem_limit,
    )

    # Preferred path: lane-dense 2-D slab when a 128-multiple divides n
    # exactly (contiguous reshape, no copy, unmasked full-width stores).
    lanes = next((c for c in (1024, 512, 256, 128) if n % c == 0), None)

    if lanes is not None:
        rows = n // lanes
        x2d = x.reshape(rows, lanes)
        tile_rows = max(sub_mult,
                        (tile_bytes // (lanes * itemsize)) // sub_mult * sub_mult)
        if tile_rows >= rows:
            tile_rows = rows                 # full-extent block is always legal
        out2d = pl.pallas_call(
            _sigmoid_kernel,
            out_shape=jax.ShapeDtypeStruct((rows, lanes), dtype),
            grid=(pl.cdiv(rows, tile_rows),),
            in_specs=[pl.BlockSpec((tile_rows, lanes), lambda i: (i, 0))],
            out_specs=pl.BlockSpec((tile_rows, lanes), lambda i: (i, 0)),
            compiler_params=compiler_params,
        )(x2d)
        return out2d.reshape(orig_shape)

    # Ragged fallback: run directly on the flat 1-D array. The boundary block
    # is masked by Pallas, so no pad/slice copies (no extra HBM passes).
    xflat = x.reshape(-1)
    grain = sub_mult * 128                   # 1024 f32 / 2048 bf16 / 4096 int8
    blk = max(grain, (tile_bytes // itemsize) // grain * grain)
    if blk >= n:
        blk = n                              # full-extent block (any length legal)
    outflat = pl.pallas_call(
        _sigmoid_kernel,
        out_shape=jax.ShapeDtypeStruct((n,), dtype),
        grid=(pl.cdiv(n, blk),),
        in_specs=[pl.BlockSpec((blk,), lambda i: (i,))],
        out_specs=pl.BlockSpec((blk,), lambda i: (i,)),
        compiler_params=compiler_params,
    )(xflat)
    return outflat.reshape(orig_shape)


if __name__ == "__main__":
    key = jax.random.PRNGKey(0)

    # NCHW like the PyTorch module would see: batch=2, channels=4, spatial=16x16
    x = jax.random.normal(key, (2, 4, 16, 16), dtype=jnp.float32)
    out = none_scaled_sigmoid(x)
    jax.block_until_ready(out)
    ref = jax.nn.sigmoid(x)
    assert out.shape == x.shape and out.dtype == x.dtype
    assert jnp.max(jnp.abs(out - ref)) < 2e-6

    # Ragged (non-128-multiple) shape exercises the copy-free 1-D fallback.
    xr = jax.random.normal(jax.random.PRNGKey(1), (3, 5, 7), dtype=jnp.float32)
    outr = none_scaled_sigmoid(xr)
    jax.block_until_ready(outr)
    refr = jax.nn.sigmoid(xr)
    assert outr.shape == xr.shape and outr.dtype == xr.dtype
    assert jnp.max(jnp.abs(outr - refr)) < 2e-6

    print("KERNEL_OK")
</pallas_src>

<mosaic_0001>
module attributes {stable_mosaic.version = 11 : i64} {
  func.func @_sigmoid_kernel(%arg0: i32, %arg1: memref<2x1024xf32, #tpu.memory_space<vmem>>, %arg2: memref<2x1024xf32, #tpu.memory_space<vmem>>) attributes {dimension_semantics = [#tpu.dimension_semantics<parallel>], iteration_bounds = array<i64: 1>, scalar_prefetch = 0 : i64, scratch_operands = 0 : i64, tpu.core_type = #tpu.core_type<tc>, window_params = [{transform_indices = @transform_0, window_bounds = array<i64: 2, 1024>}, {transform_indices = @transform_1, window_bounds = array<i64: 2, 1024>}]} {
    %c0 = arith.constant 0 : index
    %c0_0 = arith.constant 0 : index
    %0 = vector.load %arg1[%c0, %c0_0] : memref<2x1024xf32, #tpu.memory_space<vmem>>, vector<2x1024xf32>
    %cst = arith.constant 5.000000e-01 : f32
    %1 = vector.broadcast %cst : f32 to vector<2x1024xf32>
    %2 = arith.mulf %1, %0 : vector<2x1024xf32>
    %3 = math.tanh %2 : vector<2x1024xf32>
    %cst_1 = arith.constant 5.000000e-01 : f32
    %4 = vector.broadcast %cst_1 : f32 to vector<2x1024xf32>
    %5 = arith.mulf %4, %3 : vector<2x1024xf32>
    %cst_2 = arith.constant 5.000000e-01 : f32
    %6 = vector.broadcast %cst_2 : f32 to vector<2x1024xf32>
    %7 = arith.addf %5, %6 : vector<2x1024xf32>
    %c0_3 = arith.constant 0 : index
    %c0_4 = arith.constant 0 : index
    %8 = vector.load %arg2[%c0_3, %c0_4] : memref<2x1024xf32, #tpu.memory_space<vmem>>, vector<2x1024xf32>
    tpu.vector_store %arg2[%c0_3, %c0_4], %7 {strides = array<i32>} : memref<2x1024xf32, #tpu.memory_space<vmem>>, vector<2x1024xf32>,
    return
  }
  func.func @transform_0(%arg0: i32) -> (i32, i32) {
    %c0_i32 = arith.constant 0 : i32
    %c0_i32_0 = arith.constant 0 : i32
    return %arg0, %c0_i32 : i32, i32
  }
  func.func @transform_1(%arg0: i32) -> (i32, i32) {
    %c0_i32 = arith.constant 0 : i32
    %c0_i32_0 = arith.constant 0 : i32
    return %arg0, %c0_i32 : i32, i32
  }
}

</mosaic_0001>

<llo_original>
// kernel: tpu_custom_call.1
$region0: #{tpu_custom_call.1}
  #allocation0 [shape = 'u32[]', space=smem, size = 0x4, offset = 0x4, fixed_abs, tag = 'smem constant byte address 0x4 - core index']
  #allocation1 [shape = 'u32[144,128]{1,0:T(1,128)}', space=vmem, size = 0x12000, scoped, tag = 'internal scratch']
  %s0 = inlined_call_operand.hbm [shape: f32[2,1024], index: 0, kind: input, shape index: {}]
  %s1 = inlined_call_operand.hbm [shape: f32[2,1024], index: 1, kind: output, shape index: {}]
  %s2 = sld [smem:[#allocation0]]
  $region18: #{tpu_custom_call.1} parent=0
    _
  %s4 = ssub.s32 1, %s2
  %s5 = scalar_select 0, %s4, %s2
  $region1: #{tpu_custom_call.1} parent=0
    #allocation2 [shape = 'u8[8192]{0}', space=vmem, size = 0x2000, scoped, tag = 'input window, operand 0, single buffered']
    #allocation3 [shape = 's32[1]{0}', space=sflag, size = 0x4, scoped, tag = 'scoped memory for tpu_custom_call.1']
    #allocation4 [shape = 's32[1]{0}', space=sflag, size = 0x4, scoped, tag = 'scoped memory for tpu_custom_call.1']
    #allocation5 [shape = 'u8[8192]{0}', space=vmem, size = 0x2000, scoped, tag = 'output window, operand 0, single buffered']
    %6 = vsyncpa [#allocation3], 0
    %7 = vsyncpa [#allocation4], 0
    // Predicated region
    $region2: #{tpu_custom_call.1} parent=1 // pred_check
      _
    $region3: #{tpu_custom_call.1} parent=1 // pred_check_branch
      %9 = sbr.rel (0) target = $region5
    $region4: #{tpu_custom_call.1} parent=1 // pred_region
      %s11 = ssub.s32 256, 256
      %12 = vsyncadd [#allocation3], %s11
      %s14 = sshll.u32 [#allocation2], 4
      %s15 = int_to_ptr.vmem [resolvable:$true] %s14
      %17 = dma.hbm_to_vmem [thread:$0]  %s0, 256, %s15, [#allocation3]
    $region5: #{tpu_custom_call.1} parent=1 // pred_fallthru
      _
    // Predicated region
    $region6: #{tpu_custom_call.1} parent=1 // pred_check
      _
    $region7: #{tpu_custom_call.1} parent=1 // pred_check_branch
      %19 = sbr.rel (0) target = $region9
    $region8: #{tpu_custom_call.1} parent=1 // pred_region
      %20 = dma.done [#allocation3], 256
    $region9: #{tpu_custom_call.1} parent=1 // pred_fallthru
      _
    %v21 = vld [vmem:[#allocation2] sm:$0xff]
    %v22 = vld [vmem:[#allocation2 + $0x8] sm:$0xff]
    %v23 = vmul.f32 %v21, 0.5
    %v24 = vmul.f32 %v22, 0.5
    %v25 = vtanh.pop %v23
    %v26 = vtanh.pop %v24
    %v27 = vmul.f32 %v25, 0.5
    %v28 = vmul.f32 %v26, 0.5
    %v29 = vadd.f32 %v27, 0.5
    %v30 = vadd.f32 %v28, 0.5
    %31 = vst [vmem:[#allocation5] sm:$0xff] %v29
    %32 = vst [vmem:[#allocation5 + $0x8] sm:$0xff] %v30
    // Predicated region
    $region10: #{tpu_custom_call.1} parent=1 // pred_check
      _
    $region11: #{tpu_custom_call.1} parent=1 // pred_check_branch
      %34 = sbr.rel (0) target = $region13
    $region12: #{tpu_custom_call.1} parent=1 // pred_region
      %s36 = ssub.s32 256, 256
      %37 = vsyncadd [#allocation4], %s36
      %s39 = sshll.u32 [#allocation5], 4
      %s40 = int_to_ptr.vmem [resolvable:$true] %s39
      %42 = dma.vmem_to_hbm [thread:$0]  %s40, 256, %s1, [#allocation4]
    $region13: #{tpu_custom_call.1} parent=1 // pred_fallthru
      _
    // Predicated region
    $region14: #{tpu_custom_call.1} parent=1 // pred_check
      _
    $region15: #{tpu_custom_call.1} parent=1 // pred_check_branch
      %44 = sbr.rel (0) target = $region17
    $region16: #{tpu_custom_call.1} parent=1 // pred_region
      %45 = dma.done [#allocation4], 256
    $region17: #{tpu_custom_call.1} parent=1 // pred_fallthru
      _
    %46 = vsyncpa [#allocation3], 1
    %47 = vsyncpa [#allocation4], 1

</llo_original>
